<compile_context>
chip_gen: v6e
topology: v6e:2x2x1
jax: 0.10.0
libtpu: 0.0.40
codegen_flags: <defaults>
</compile_context>

<pallas_src>
import jax
import jax.numpy as jnp
from jax.experimental import pallas as pl
from jax.experimental.pallas import tpu as pltpu

STATE_SIZE = 42     # 6x7 connect-four board
ACTION_SIZE = 7     # 7 columns
H1, H2, H3 = 80, 160, 42
AP = 8              # per-channel action lanes (7 actions + 1 pad)
KPAD = 128          # lane-padded input width (2*STATE_SIZE = 84 -> 128)
NPAD = 128          # lane-dense output width
BN_EPS = 1e-5


# ---------------------------------------------------------------------------
# Kernel: 4 lane-dense matmuls, bias broadcast-add + relu between them.
# ---------------------------------------------------------------------------
def dqn_kernel(x_ref,                     # (TM, 128) bf16   [chan0 | chan1 | pad]
               w1_ref, b1_ref,            # (128, 160) bf16, (1, 160) f32
               w2_ref, b2_ref,            # (160, 320) bf16, (1, 320) f32
               w34_ref, b34_ref,          # (320, 16) bf16,  (1, 16) f32
               w5_ref, b5_ref,            # (16, 128) bf16,  (1, 128) f32
               o_ref):                    # (TM, 128) bf16
    # fc1 -> bn1(eval) -> relu          (BN scale folded into the weights)
    h = jnp.dot(x_ref[...], w1_ref[...], preferred_element_type=jnp.float32)
    h = jnp.maximum(h + b1_ref[...], 0.0).astype(jnp.bfloat16)          # (TM, 160)

    # fc2 -> bn2(eval) -> relu
    h = jnp.dot(h, w2_ref[...], preferred_element_type=jnp.float32)
    h = jnp.maximum(h + b2_ref[...], 0.0).astype(jnp.bfloat16)          # (TM, 320)

    # fc3 -> bn3(eval) -> linear_activation (folded into one matmul) -> relu
    h = jnp.dot(h, w34_ref[...], preferred_element_type=jnp.float32)
    h = jnp.maximum(h + b34_ref[...], 0.0).astype(jnp.bfloat16)         # (TM, 16)

    # head on view(-1, 2A): lanes [0:7]=chan0, [8:15]=chan1 -> one matmul
    out = jnp.dot(h, w5_ref[...], preferred_element_type=jnp.float32)
    o_ref[...] = jnp.maximum(out + b5_ref[...], 0.0).astype(o_ref.dtype)  # lane-dense store


def _round_up(n, m):
    return ((n + m - 1) // m) * m


# ---------------------------------------------------------------------------
# One-time host-side folding / padding / casting (hoisted out of the forward)
# ---------------------------------------------------------------------------
def prepare_params(params):
    (w1, b1, w2, b2, w3, b3, w4, b4, w5, b5, bn_scale, bn_shift) = params
    s1, t1 = bn_scale[0], bn_shift[0]        # (2,), (2,) per-channel scalars
    s2, t2 = bn_scale[1], bn_shift[1]
    s3, t3 = bn_scale[2], bn_shift[2]

    # Layer 1: block-diagonal, BN1 folded.  input lanes [0:42 | 42:84 | pad]
    w1bd = jnp.zeros((KPAD, 2 * H1), jnp.float32)
    w1bd = w1bd.at[0:STATE_SIZE, 0:H1].set(s1[0] * w1)
    w1bd = w1bd.at[STATE_SIZE:2 * STATE_SIZE, H1:2 * H1].set(s1[1] * w1)
    b1l = jnp.concatenate([s1[0] * b1[0] + t1[0],
                           s1[1] * b1[0] + t1[1]])[None, :]              # (1, 160)

    # Layer 2: block-diagonal, BN2 folded.
    w2bd = jnp.zeros((2 * H1, 2 * H2), jnp.float32)
    w2bd = w2bd.at[0:H1, 0:H2].set(s2[0] * w2)
    w2bd = w2bd.at[H1:2 * H1, H2:2 * H2].set(s2[1] * w2)
    b2l = jnp.concatenate([s2[0] * b2[0] + t2[0],
                           s2[1] * b2[0] + t2[1]])[None, :]              # (1, 320)

    # Layers 3+4 folded:  out_c = s3_c * (h_c @ (w3@w4)) + bias34_c
    w34 = w3 @ w4                                                        # (160, 7)
    w4_colsum = jnp.sum(w4, axis=0)                                      # (7,)
    bias34_0 = s3[0] * (b3[0] @ w4) + t3[0] * w4_colsum + b4[0]          # (7,)
    bias34_1 = s3[1] * (b3[0] @ w4) + t3[1] * w4_colsum + b4[0]
    w34bd = jnp.zeros((2 * H2, 2 * AP), jnp.float32)
    w34bd = w34bd.at[0:H2, 0:ACTION_SIZE].set(s3[0] * w34)
    w34bd = w34bd.at[H2:2 * H2, AP:AP + ACTION_SIZE].set(s3[1] * w34)
    b34l = jnp.zeros((1, 2 * AP), jnp.float32)
    b34l = b34l.at[0, 0:ACTION_SIZE].set(bias34_0)
    b34l = b34l.at[0, AP:AP + ACTION_SIZE].set(bias34_1)

    # Head on view(-1, 2A): rows 0..6 <- w5[0:7], rows 8..14 <- w5[7:14].
    w5p = jnp.zeros((2 * AP, NPAD), jnp.float32)
    w5p = w5p.at[0:ACTION_SIZE, 0:ACTION_SIZE].set(w5[0:ACTION_SIZE])
    w5p = w5p.at[AP:AP + ACTION_SIZE, 0:ACTION_SIZE].set(w5[ACTION_SIZE:2 * ACTION_SIZE])
    b5p = jnp.zeros((1, NPAD), jnp.float32).at[0, 0:ACTION_SIZE].set(b5[0])

    return (w1bd.astype(jnp.bfloat16), b1l,
            w2bd.astype(jnp.bfloat16), b2l,
            w34bd.astype(jnp.bfloat16), b34l,
            w5p.astype(jnp.bfloat16), b5p)


# ---------------------------------------------------------------------------
# Forward wrapper (jit this; `prepared` comes from prepare_params)
# ---------------------------------------------------------------------------
def dqn_forward(x, prepared, *, tm=1024):
    """x: (B, 2, STATE_SIZE) float32 -> (B, ACTION_SIZE) float32 (eval mode)."""
    w1bd, b1l, w2bd, b2l, w34bd, b34l, w5p, b5p = prepared
    B = x.shape[0]

    # Batch tile: multiple of 16 (bf16 sublane packing), capped so the grid has
    # >= 2 steps when B allows it (keeps both v7x TensorCores busy).
    tm16 = max(16, (int(tm) // 16) * 16)
    TM = min(tm16, _round_up(-(-B // 2), 16))
    Bp = _round_up(B, TM)

    # Lane-stacked input: row b = [x[b,0,:] | x[b,1,:] | zeros], padded batch.
    xl = x.reshape(B, 2 * STATE_SIZE)
    xp = jnp.pad(xl, ((0, Bp - B), (0, KPAD - 2 * STATE_SIZE))).astype(jnp.bfloat16)

    const = lambda shape: pl.BlockSpec(shape, lambda i: (0, 0))
    out_pad = pl.pallas_call(
        dqn_kernel,
        out_shape=jax.ShapeDtypeStruct((Bp, NPAD), jnp.bfloat16),
        grid=(Bp // TM,),
        in_specs=[
            pl.BlockSpec((TM, KPAD), lambda i: (i, 0)),                   # x tile
            const((KPAD, 2 * H1)), const((1, 2 * H1)),                    # w1bd, b1
            const((2 * H1, 2 * H2)), const((1, 2 * H2)),                  # w2bd, b2
            const((2 * H2, 2 * AP)), const((1, 2 * AP)),                  # w34bd, b34
            const((2 * AP, NPAD)), const((1, NPAD)),                      # w5p, b5
        ],
        out_specs=pl.BlockSpec((TM, NPAD), lambda i: (i, 0)),
        compiler_params=pltpu.CompilerParams(
            dimension_semantics=("parallel",),        # megacore sharding on v7x
            vmem_limit_bytes=32 * 1024 * 1024,
        ),
    )(xp, w1bd, b1l, w2bd, b2l, w34bd, b34l, w5p, b5p)

    return out_pad[:B, :ACTION_SIZE].astype(jnp.float32)


# ---------------------------------------------------------------------------
# Deterministic parameter construction (PyTorch-style Linear init, BN eval stats)
# ---------------------------------------------------------------------------
def _linear(key, fan_in, fan_out):
    k_w, k_b = jax.random.split(key)
    bound = 1.0 / (fan_in ** 0.5)
    w = jax.random.uniform(k_w, (fan_in, fan_out), jnp.float32, -bound, bound)  # stored as W^T
    b = jax.random.uniform(k_b, (1, fan_out), jnp.float32, -bound, bound)
    return w, b


def make_params(key):
    ks = jax.random.split(key, 9)
    w1, b1 = _linear(ks[0], STATE_SIZE, H1)
    w2, b2 = _linear(ks[1], H1, H2)
    w3, b3 = _linear(ks[2], H2, H3)
    w4, b4 = _linear(ks[3], H3, ACTION_SIZE)
    w5, b5 = _linear(ks[4], 2 * ACTION_SIZE, ACTION_SIZE)

    # BatchNorm1d(2) eval-mode parameters for bn1/bn2/bn3, folded to per-channel
    # scale/shift scalars:  y = x * scale + shift
    gamma = jax.random.uniform(ks[5], (3, 2), jnp.float32, 0.5, 1.5)
    beta = 0.1 * jax.random.normal(ks[6], (3, 2), jnp.float32)
    run_mean = 0.1 * jax.random.normal(ks[7], (3, 2), jnp.float32)
    run_var = jax.random.uniform(ks[8], (3, 2), jnp.float32, 0.5, 1.5)
    bn_scale = gamma * jax.lax.rsqrt(run_var + BN_EPS)
    bn_shift = beta - run_mean * bn_scale

    return (w1, b1, w2, b2, w3, b3, w4, b4, w5, b5, bn_scale, bn_shift)


# ---------------------------------------------------------------------------
# Pure-JAX reference (mirrors the PyTorch forward in eval mode, full f32)
# ---------------------------------------------------------------------------
def dqn_ref(x, params):
    (w1, b1, w2, b2, w3, b3, w4, b4, w5, b5, bn_scale, bn_shift) = params

    def bn(h, l):  # h: (B, 2, F)
        return h * bn_scale[l][None, :, None] + bn_shift[l][None, :, None]

    h = jnp.maximum(bn(x @ w1 + b1, 0), 0.0)
    h = jnp.maximum(bn(h @ w2 + b2, 1), 0.0)
    h = bn(h @ w3 + b3, 2)
    h = jnp.maximum(h @ w4 + b4, 0.0)                 # (B, 2, A)
    h = h.reshape(x.shape[0], 2 * ACTION_SIZE)        # view(-1, 2A)
    return jnp.maximum(h @ w5 + b5, 0.0)              # (B, A)


if __name__ == "__main__":
    key = jax.random.PRNGKey(0)
    k_x, k_p = jax.random.split(key)
    params = make_params(k_p)
    prepared = prepare_params(params)                 # one-time host-side folding

    fwd = jax.jit(dqn_forward, static_argnames=("tm",))

    # (B=2: tiny single-tile), (B=40, tm=16: multi-tile grid), (B=300: capped-TM, 2-step grid)
    for B, tile in ((2, 1024), (40, 16), (300, 1024)):
        x = jax.random.normal(jax.random.fold_in(k_x, B), (B, 2, STATE_SIZE), jnp.float32)
        out = jax.block_until_ready(fwd(x, prepared, tm=tile))
        ref = jax.block_until_ready(dqn_ref(x, params))
        assert out.shape == (B, ACTION_SIZE), out.shape
        max_err = float(jnp.max(jnp.abs(out - ref)))
        assert max_err < 5e-2, f"B={B}: mismatch vs reference (bf16 path): {max_err}"

    print("KERNEL_OK")
</pallas_src>

<mosaic_0001>
module attributes {stable_mosaic.version = 11 : i64} {
  func.func @dqn_kernel(%arg0: i32, %arg1: memref<16x128xbf16, #tpu.memory_space<vmem>>, %arg2: memref<128x160xbf16, #tpu.memory_space<vmem>>, %arg3: memref<1x160xf32, #tpu.memory_space<vmem>>, %arg4: memref<160x320xbf16, #tpu.memory_space<vmem>>, %arg5: memref<1x320xf32, #tpu.memory_space<vmem>>, %arg6: memref<320x16xbf16, #tpu.memory_space<vmem>>, %arg7: memref<1x16xf32, #tpu.memory_space<vmem>>, %arg8: memref<16x128xbf16, #tpu.memory_space<vmem>>, %arg9: memref<1x128xf32, #tpu.memory_space<vmem>>, %arg10: memref<16x128xbf16, #tpu.memory_space<vmem>>) attributes {dimension_semantics = [#tpu.dimension_semantics<parallel>], iteration_bounds = array<i64: 1>, scalar_prefetch = 0 : i64, scratch_operands = 0 : i64, tpu.core_type = #tpu.core_type<tc>, window_params = [{transform_indices = @transform_0, window_bounds = array<i64: 16, 128>}, {pipeline_mode = #tpu.pipeline_mode<synchronous>, transform_indices = @transform_1, window_bounds = array<i64: 128, 160>}, {pipeline_mode = #tpu.pipeline_mode<synchronous>, transform_indices = @transform_2, window_bounds = array<i64: 1, 160>}, {pipeline_mode = #tpu.pipeline_mode<synchronous>, transform_indices = @transform_3, window_bounds = array<i64: 160, 320>}, {pipeline_mode = #tpu.pipeline_mode<synchronous>, transform_indices = @transform_4, window_bounds = array<i64: 1, 320>}, {pipeline_mode = #tpu.pipeline_mode<synchronous>, transform_indices = @transform_5, window_bounds = array<i64: 320, 16>}, {pipeline_mode = #tpu.pipeline_mode<synchronous>, transform_indices = @transform_6, window_bounds = array<i64: 1, 16>}, {pipeline_mode = #tpu.pipeline_mode<synchronous>, transform_indices = @transform_7, window_bounds = array<i64: 16, 128>}, {pipeline_mode = #tpu.pipeline_mode<synchronous>, transform_indices = @transform_8, window_bounds = array<i64: 1, 128>}, {transform_indices = @transform_9, window_bounds = array<i64: 16, 128>}]} {
    %c0 = arith.constant 0 : index
    %c0_0 = arith.constant 0 : index
    %0 = vector.load %arg1[%c0, %c0_0] : memref<16x128xbf16, #tpu.memory_space<vmem>>, vector<16x128xbf16>
    %c0_1 = arith.constant 0 : index
    %c0_2 = arith.constant 0 : index
    %1 = vector.load %arg2[%c0_1, %c0_2] : memref<128x160xbf16, #tpu.memory_space<vmem>>, vector<128x160xbf16>
    %cst = arith.constant dense<0.000000e+00> : vector<16x160xf32>
    %2 = tpu.matmul %0, %1, %cst {dimension_numbers = #tpu.dot_dimension_numbers<[1], [0], [0], [1], [0, 0, 1, 1], [], []>} : vector<16x128xbf16>, vector<128x160xbf16>, vector<16x160xf32> -> vector<16x160xf32>
    %c0_3 = arith.constant 0 : index
    %c0_4 = arith.constant 0 : index
    %3 = vector.load %arg3[%c0_3, %c0_4] : memref<1x160xf32, #tpu.memory_space<vmem>>, vector<1x160xf32>
    %4 = vector.broadcast %3 : vector<1x160xf32> to vector<16x160xf32>
    %5 = arith.addf %2, %4 : vector<16x160xf32>
    %cst_5 = arith.constant 0.000000e+00 : f32
    %6 = vector.broadcast %cst_5 : f32 to vector<16x160xf32>
    %7 = arith.maximumf %5, %6 : vector<16x160xf32>
    %8 = arith.truncf %7 : vector<16x160xf32> to vector<16x160xbf16>
    %c0_6 = arith.constant 0 : index
    %c0_7 = arith.constant 0 : index
    %9 = vector.load %arg4[%c0_6, %c0_7] : memref<160x320xbf16, #tpu.memory_space<vmem>>, vector<160x320xbf16>
    %cst_8 = arith.constant dense<0.000000e+00> : vector<16x320xf32>
    %10 = tpu.matmul %8, %9, %cst_8 {dimension_numbers = #tpu.dot_dimension_numbers<[1], [0], [0], [1], [0, 0, 1, 1], [], []>} : vector<16x160xbf16>, vector<160x320xbf16>, vector<16x320xf32> -> vector<16x320xf32>
    %c0_9 = arith.constant 0 : index
    %c0_10 = arith.constant 0 : index
    %11 = vector.load %arg5[%c0_9, %c0_10] : memref<1x320xf32, #tpu.memory_space<vmem>>, vector<1x320xf32>
    %12 = vector.broadcast %11 : vector<1x320xf32> to vector<16x320xf32>
    %13 = arith.addf %10, %12 : vector<16x320xf32>
    %cst_11 = arith.constant 0.000000e+00 : f32
    %14 = vector.broadcast %cst_11 : f32 to vector<16x320xf32>
    %15 = arith.maximumf %13, %14 : vector<16x320xf32>
    %16 = arith.truncf %15 : vector<16x320xf32> to vector<16x320xbf16>
    %c0_12 = arith.constant 0 : index
    %c0_13 = arith.constant 0 : index
    %17 = vector.load %arg6[%c0_12, %c0_13] : memref<320x16xbf16, #tpu.memory_space<vmem>>, vector<320x16xbf16>
    %cst_14 = arith.constant dense<0.000000e+00> : vector<16x16xf32>
    %18 = tpu.matmul %16, %17, %cst_14 {dimension_numbers = #tpu.dot_dimension_numbers<[1], [0], [0], [1], [0, 0, 1, 1], [], []>} : vector<16x320xbf16>, vector<320x16xbf16>, vector<16x16xf32> -> vector<16x16xf32>
    %c0_15 = arith.constant 0 : index
    %c0_16 = arith.constant 0 : index
    %19 = vector.load %arg7[%c0_15, %c0_16] : memref<1x16xf32, #tpu.memory_space<vmem>>, vector<1x16xf32>
    %20 = vector.broadcast %19 : vector<1x16xf32> to vector<16x16xf32>
    %21 = arith.addf %18, %20 : vector<16x16xf32>
    %cst_17 = arith.constant 0.000000e+00 : f32
    %22 = vector.broadcast %cst_17 : f32 to vector<16x16xf32>
    %23 = arith.maximumf %21, %22 : vector<16x16xf32>
    %24 = arith.truncf %23 : vector<16x16xf32> to vector<16x16xbf16>
    %c0_18 = arith.constant 0 : index
    %c0_19 = arith.constant 0 : index
    %25 = vector.load %arg8[%c0_18, %c0_19] : memref<16x128xbf16, #tpu.memory_space<vmem>>, vector<16x128xbf16>
    %cst_20 = arith.constant dense<0.000000e+00> : vector<16x128xf32>
    %26 = tpu.matmul %24, %25, %cst_20 {dimension_numbers = #tpu.dot_dimension_numbers<[1], [0], [0], [1], [0, 0, 1, 1], [], []>} : vector<16x16xbf16>, vector<16x128xbf16>, vector<16x128xf32> -> vector<16x128xf32>
    %c0_21 = arith.constant 0 : index
    %c0_22 = arith.constant 0 : index
    %27 = vector.load %arg9[%c0_21, %c0_22] : memref<1x128xf32, #tpu.memory_space<vmem>>, vector<1x128xf32>
    %28 = vector.broadcast %27 : vector<1x128xf32> to vector<16x128xf32>
    %29 = arith.addf %26, %28 : vector<16x128xf32>
    %cst_23 = arith.constant 0.000000e+00 : f32
    %30 = vector.broadcast %cst_23 : f32 to vector<16x128xf32>
    %31 = arith.maximumf %29, %30 : vector<16x128xf32>
    %32 = arith.truncf %31 : vector<16x128xf32> to vector<16x128xbf16>
    %c0_24 = arith.constant 0 : index
    %c0_25 = arith.constant 0 : index
    %33 = vector.load %arg10[%c0_24, %c0_25] : memref<16x128xbf16, #tpu.memory_space<vmem>>, vector<16x128xbf16>
    tpu.vector_store %arg10[%c0_24, %c0_25], %32 {strides = array<i32>} : memref<16x128xbf16, #tpu.memory_space<vmem>>, vector<16x128xbf16>,
    return
  }
  func.func @transform_0(%arg0: i32) -> (i32, i32) {
    %c0_i32 = arith.constant 0 : i32
    %c0_i32_0 = arith.constant 0 : i32
    return %arg0, %c0_i32 : i32, i32
  }
  func.func @transform_1(%arg0: i32) -> (i32, i32) {
    %c0_i32 = arith.constant 0 : i32
    %c0_i32_0 = arith.constant 0 : i32
    %c0_i32_1 = arith.constant 0 : i32
    return %c0_i32, %c0_i32_0 : i32, i32
  }
  func.func @transform_2(%arg0: i32) -> (i32, i32) {
    %c0_i32 = arith.constant 0 : i32
    %c0_i32_0 = arith.constant 0 : i32
    %c0_i32_1 = arith.constant 0 : i32
    return %c0_i32, %c0_i32_0 : i32, i32
  }
  func.func @transform_3(%arg0: i32) -> (i32, i32) {
    %c0_i32 = arith.constant 0 : i32
    %c0_i32_0 = arith.constant 0 : i32
    %c0_i32_1 = arith.constant 0 : i32
    return %c0_i32, %c0_i32_0 : i32, i32
  }
  func.func @transform_4(%arg0: i32) -> (i32, i32) {
    %c0_i32 = arith.constant 0 : i32
    %c0_i32_0 = arith.constant 0 : i32
    %c0_i32_1 = arith.constant 0 : i32
    return %c0_i32, %c0_i32_0 : i32, i32
  }
  func.func @transform_5(%arg0: i32) -> (i32, i32) {
    %c0_i32 = arith.constant 0 : i32
    %c0_i32_0 = arith.constant 0 : i32
    %c0_i32_1 = arith.constant 0 : i32
    return %c0_i32, %c0_i32_0 : i32, i32
  }
  func.func @transform_6(%arg0: i32) -> (i32, i32) {
    %c0_i32 = arith.constant 0 : i32
    %c0_i32_0 = arith.constant 0 : i32
    %c0_i32_1 = arith.constant 0 : i32
    return %c0_i32, %c0_i32_0 : i32, i32
  }
  func.func @transform_7(%arg0: i32) -> (i32, i32) {
    %c0_i32 = arith.constant 0 : i32
    %c0_i32_0 = arith.constant 0 : i32
    %c0_i32_1 = arith.constant 0 : i32
    return %c0_i32, %c0_i32_0 : i32, i32
  }
  func.func @transform_8(%arg0: i32) -> (i32, i32) {
    %c0_i32 = arith.constant 0 : i32
    %c0_i32_0 = arith.constant 0 : i32
    %c0_i32_1 = arith.constant 0 : i32
    return %c0_i32, %c0_i32_0 : i32, i32
  }
  func.func @transform_9(%arg0: i32) -> (i32, i32) {
    %c0_i32 = arith.constant 0 : i32
    %c0_i32_0 = arith.constant 0 : i32
    return %arg0, %c0_i32 : i32, i32
  }
}

</mosaic_0001>

<llo_original>
// kernel: dqn_forward.1
$region0: #{dqn_forward.1}
  #allocation0 [shape = 'u32[]', space=smem, size = 0x4, offset = 0x4, fixed_abs, tag = 'smem constant byte address 0x4 - core index']
  #allocation1 [shape = 'u32[144,128]{1,0:T(1,128)}', space=vmem, size = 0x12000, scoped, tag = 'internal scratch']
  %s0 = inlined_call_operand.vmem [shape: bf16[16,128], index: 0, kind: input, shape index: {}]
  %s1 = inlined_call_operand.vmem [shape: bf16[128,160], index: 1, kind: input, shape index: {}]
  %s2 = inlined_call_operand.vmem [shape: f32[1,160], index: 2, kind: input, shape index: {}]
  %s3 = inlined_call_operand.vmem [shape: bf16[160,320], index: 3, kind: input, shape index: {}]
  %s4 = inlined_call_operand.vmem [shape: f32[1,320], index: 4, kind: input, shape index: {}]
  %s5 = inlined_call_operand.vmem [shape: bf16[320,16], index: 5, kind: input, shape index: {}]
  %s6 = inlined_call_operand.vmem [shape: f32[1,16], index: 6, kind: input, shape index: {}]
  %s7 = inlined_call_operand.vmem [shape: bf16[16,128], index: 7, kind: input, shape index: {}]
  %s8 = inlined_call_operand.vmem [shape: f32[1,128], index: 8, kind: input, shape index: {}]
  %s9 = inlined_call_operand.vmem [shape: bf16[16,128], index: 9, kind: output, shape index: {}]
  %s10 = sld [smem:[#allocation0]]
  $region46: #{dqn_forward.1} parent=0
    _
  %s12 = ssub.s32 1, %s10
  %s13 = scalar_select 0, %s12, %s10
  // Predicated region
  $region2: #{dqn_forward.1} parent=0 // pred_check
    _
  $region3: #{dqn_forward.1} parent=0 // pred_check_branch
    %15 = sbr.rel (0) target = $region5
  $region4: #{dqn_forward.1} parent=0 // pred_region
    _
  $region5: #{dqn_forward.1} parent=0 // pred_fallthru
    _
  // Predicated region
  $region6: #{dqn_forward.1} parent=0 // pred_check
    _
  $region7: #{dqn_forward.1} parent=0 // pred_check_branch
    %17 = sbr.rel (0) target = $region9
  $region8: #{dqn_forward.1} parent=0 // pred_region
    _
  $region9: #{dqn_forward.1} parent=0 // pred_fallthru
    _
  // Predicated region
  $region10: #{dqn_forward.1} parent=0 // pred_check
    _
  $region11: #{dqn_forward.1} parent=0 // pred_check_branch
    %19 = sbr.rel (0) target = $region13
  $region12: #{dqn_forward.1} parent=0 // pred_region
    _
  $region13: #{dqn_forward.1} parent=0 // pred_fallthru
    _
  // Predicated region
  $region14: #{dqn_forward.1} parent=0 // pred_check
    _
  $region15: #{dqn_forward.1} parent=0 // pred_check_branch
    %21 = sbr.rel (0) target = $region17
  $region16: #{dqn_forward.1} parent=0 // pred_region
    _
  $region17: #{dqn_forward.1} parent=0 // pred_fallthru
    _
  // Predicated region
  $region18: #{dqn_forward.1} parent=0 // pred_check
    _
  $region19: #{dqn_forward.1} parent=0 // pred_check_branch
    %23 = sbr.rel (0) target = $region21
  $region20: #{dqn_forward.1} parent=0 // pred_region
    _
  $region21: #{dqn_forward.1} parent=0 // pred_fallthru
    _
  // Predicated region
  $region22: #{dqn_forward.1} parent=0 // pred_check
    _
  $region23: #{dqn_forward.1} parent=0 // pred_check_branch
    %25 = sbr.rel (0) target = $region25
  $region24: #{dqn_forward.1} parent=0 // pred_region
    _
  $region25: #{dqn_forward.1} parent=0 // pred_fallthru
    _
  // Predicated region
  $region26: #{dqn_forward.1} parent=0 // pred_check
    _
  $region27: #{dqn_forward.1} parent=0 // pred_check_branch
    %27 = sbr.rel (0) target = $region29
  $region28: #{dqn_forward.1} parent=0 // pred_region
    _
  $region29: #{dqn_forward.1} parent=0 // pred_fallthru
    _
  // Predicated region
  $region30: #{dqn_forward.1} parent=0 // pred_check
    _
  $region31: #{dqn_forward.1} parent=0 // pred_check_branch
    %29 = sbr.rel (0) target = $region33
  $region32: #{dqn_forward.1} parent=0 // pred_region
    _
  $region33: #{dqn_forward.1} parent=0 // pred_fallthru
    _
  // Predicated region
  $region34: #{dqn_forward.1} parent=0 // pred_check
    _
  $region35: #{dqn_forward.1} parent=0 // pred_check_branch
    %31 = sbr.rel (0) target = $region37
  $region36: #{dqn_forward.1} parent=0 // pred_region
    _
  $region37: #{dqn_forward.1} parent=0 // pred_fallthru
    _
  %v33 = vld [vmem:[%s0] sm:$0xf]
  %v34 = vld [vmem:[%s0 + $0x4] sm:$0xf]
  %v35 = vld [vmem:[%s1] sm:$0xff]
  %v36 = vld [vmem:[%s1 + $0x8] sm:$0xff]
  %v37 = vld [vmem:[%s1 + $0x10] sm:$0xff]
  %v38 = vld [vmem:[%s1 + $0x18] sm:$0xff]
  %v39 = vld [vmem:[%s1 + $0x20] sm:$0xff]
  %v40 = vld [vmem:[%s1 + $0x28] sm:$0xff]
  %v41 = vld [vmem:[%s1 + $0x30] sm:$0xff]
  %v42 = vld [vmem:[%s1 + $0x38] sm:$0xff]
  %v43 = vld [vmem:[%s1 + $0x40] sm:$0xff]
  %v44 = vld [vmem:[%s1 + $0x48] sm:$0xff]
  %v45 = vld [vmem:[%s1 + $0x50] sm:$0xff]
  %v46 = vld [vmem:[%s1 + $0x58] sm:$0xff]
  %v47 = vld [vmem:[%s1 + $0x60] sm:$0xff]
  %v48 = vld [vmem:[%s1 + $0x68] sm:$0xff]
  %v49 = vld [vmem:[%s1 + $0x70] sm:$0xff]
  %v50 = vld [vmem:[%s1 + $0x78] sm:$0xff]
  %v51 = vld [vmem:[%s2] sm:$0x3]
  %v53 = vlaneseq
  %v54 = vshrl.u32 %v53, 7
  %v55 = vsub.s32 0, %v54
  %v56 = vrot.slane %v51, %v55
  %v57 = vlaneseq
  %v58 = vshrl.u32 %v57, 7
  %v59 = vsub.s32 1, %v58
  %v60 = vrot.slane %v51, %v59
  %v65 = vunpack.c.l.b16 %v33
  %v66 = vunpack.c.l.b16 %v34
  %v67 = vpack.c.b16 %v66, %v65
  %v85 = vunpack.c.l.b16 %v35
  %v86 = vunpack.c.h.b16 %v35
  %v87 = vunpack.c.l.b16 %v36
  %v88 = vunpack.c.h.b16 %v36
  %v89 = vunpack.c.l.b16 %v37
  %v90 = vunpack.c.h.b16 %v37
  %v91 = vunpack.c.l.b16 %v38
  %v92 = vunpack.c.h.b16 %v38
  %v93 = vunpack.c.l.b16 %v39
  %v94 = vunpack.c.h.b16 %v39
  %v95 = vunpack.c.l.b16 %v40
  %v96 = vunpack.c.h.b16 %v40
  %v97 = vunpack.c.l.b16 %v41
  %v98 = vunpack.c.h.b16 %v41
  %v99 = vunpack.c.l.b16 %v42
  %v100 = vunpack.c.h.b16 %v42
  %v101 = vunpack.c.l.b16 %v43
  %v102 = vunpack.c.h.b16 %v43
  %v103 = vunpack.c.l.b16 %v44
  %v104 = vunpack.c.h.b16 %v44
  %v105 = vunpack.c.l.b16 %v45
  %v106 = vunpack.c.h.b16 %v45
  %v107 = vunpack.c.l.b16 %v46
  %v108 = vunpack.c.h.b16 %v46
  %v109 = vunpack.c.l.b16 %v47
  %v110 = vunpack.c.h.b16 %v47
  %v111 = vunpack.c.l.b16 %v48
  %v112 = vunpack.c.h.b16 %v48
  %v113 = vunpack.c.l.b16 %v49
  %v114 = vunpack.c.h.b16 %v49
  %v115 = vunpack.c.l.b16 %v50
  %v116 = vunpack.c.h.b16 %v50
  %v117 = vpack.c.b16 %v87, %v85
  %v118 = vpack.c.b16 %v88, %v86
  %v119 = vpack.c.b16 %v91, %v89
  %v120 = vpack.c.b16 %v92, %v90
  %v121 = vpack.c.b16 %v95, %v93
  %v122 = vpack.c.b16 %v96, %v94
  %v123 = vpack.c.b16 %v99, %v97
  %v124 = vpack.c.b16 %v100, %v98
  %v125 = vpack.c.b16 %v103, %v101
  %v126 = vpack.c.b16 %v104, %v102
  %v127 = vpack.c.b16 %v107, %v105
  %v128 = vpack.c.b16 %v108, %v106
  %v129 = vpack.c.b16 %v111, %v109
  %v130 = vpack.c.b16 %v112, %v110
  %v131 = vpack.c.b16 %v115, %v113
  %v132 = vpack.c.b16 %v116, %v114
  %149 = vmatprep.subr.bf16.mxu0 %v132
  %150 = vmatpush1.bf16.msra.mxu0 %v131
  %151 = vmatprep.subr.bf16.mxu0 %v130
  %152 = vmatpush1.bf16.msra.mxu0 %v129
  %153 = vmatprep.subr.bf16.mxu0 %v128
  %154 = vmatpush1.bf16.msra.mxu0 %v127
  %155 = vmatprep.subr.bf16.mxu0 %v126
  %156 = vmatpush1.bf16.msra.mxu0 %v125
  %157 = vmatprep.subr.bf16.mxu0 %v124
  %158 = vmatpush1.bf16.msra.mxu0 %v123
  %159 = vmatprep.subr.bf16.mxu0 %v122
  %160 = vmatpush1.bf16.msra.mxu0 %v121
  %161 = vmatprep.subr.bf16.mxu0 %v120
  %162 = vmatpush1.bf16.msra.mxu0 %v119
  %163 = vmatprep.subr.bf16.mxu0 %v118
  %164 = vmatpush1.bf16.msra.mxu0 %v117
  %165 = vmatprep.subr.bf16.mxu0 0
  %166 = vmatpush2.bf16.msra.mxu0 0
  %167 = vmatprep.subr.bf16.mxu0 0
  %168 = vmatpush2.bf16.msra.mxu0 0
  %169 = vmatprep.subr.bf16.mxu0 0
  %170 = vmatpush2.bf16.msra.mxu0 0
  %171 = vmatprep.subr.bf16.mxu0 0
  %172 = vmatpush2.bf16.msra.mxu0 0
  %173 = vmatprep.subr.bf16.mxu0 0
  %174 = vmatpush2.bf16.msra.mxu0 0
  %175 = vmatprep.subr.bf16.mxu0 0
  %176 = vmatpush2.bf16.msra.mxu0 0
  %177 = vmatprep.subr.bf16.mxu0 0
  %178 = vmatpush2.bf16.msra.mxu0 0
  %179 = vmatprep.subr.bf16.mxu0 0
  %180 = vmatpush2.bf16.msra.mxu0 0
  %181 = vmatprep.mubr.bf16.mxu0 0
  %182 = vmatmul.mubr.bf16.gmra.mxu0 %v67
  %v183 = vpop.f32.mrf.mxu0
  %v184 = vadd.f32 %v56, %v183
  %v185 = vpop.f32.mrf.mxu0
  %v186 = vadd.f32 %v60, %v185
  %v187 = vpop.f32.mrf.mxu0
  %v188 = vadd.f32 %v56, %v187
  %v189 = vpop.f32.mrf.mxu0
  %v190 = vadd.f32 %v60, %v189
  %191 = vdwg.mxu0
  %v192 = vmax.f32 %v184, 0.0
  %v193 = vmax.f32 %v186, 0.0
  %v194 = vmax.f32 %v188, 0.0
  %v195 = vmax.f32 %v190, 0.0
  %v196 = vpack.c.bf16 %v194, %v192
  %v197 = vpack.c.bf16 %v195, %v193
  %v198 = vld [vmem:[%s3] sm:$0xff]
  %v199 = vld [vmem:[%s3 + $0x8] sm:$0xf]
  %v200 = vld [vmem:[%s3 + $0xc] sm:$0xff]
  %v201 = vld [vmem:[%s3 + $0x14] sm:$0xf]
  %v202 = vld [vmem:[%s3 + $0x18] sm:$0xff]
  %v203 = vld [vmem:[%s3 + $0x20] sm:$0xf]
  %v204 = vld [vmem:[%s3 + $0x24] sm:$0xff]
  %v205 = vld [vmem:[%s3 + $0x2c] sm:$0xf]
  %v206 = vld [vmem:[%s3 + $0x30] sm:$0xff]
  %v207 = vld [vmem:[%s3 + $0x38] sm:$0xf]
  %v208 = vld [vmem:[%s3 + $0x3c] sm:$0xff]
  %v209 = vld [vmem:[%s3 + $0x44] sm:$0xf]
  %v210 = vld [vmem:[%s3 + $0x48] sm:$0xff]
  %v211 = vld [vmem:[%s3 + $0x50] sm:$0xf]
  %v212 = vld [vmem:[%s3 + $0x54] sm:$0xff]
  %v213 = vld [vmem:[%s3 + $0x5c] sm:$0xf]
  %v214 = vld [vmem:[%s3 + $0x60] sm:$0xff]
  %v215 = vld [vmem:[%s3 + $0x68] sm:$0xf]
  %v216 = vld [vmem:[%s3 + $0x6c] sm:$0xff]
  %v217 = vld [vmem:[%s3 + $0x74] sm:$0xf]
  %v218 = vld [vmem:[%s3 + $0x78] sm:$0xff]
  %v219 = vld [vmem:[%s3 + $0x80] sm:$0xf]
  %v220 = vld [vmem:[%s3 + $0x84] sm:$0xff]
  %v221 = vld [vmem:[%s3 + $0x8c] sm:$0xf]
  %v222 = vld [vmem:[%s3 + $0x90] sm:$0xff]
  %v223 = vld [vmem:[%s3 + $0x98] sm:$0xf]
  %v224 = vld [vmem:[%s3 + $0x9c] sm:$0xff]
  %v225 = vld [vmem:[%s3 + $0xa4] sm:$0xf]
  %v226 = vld [vmem:[%s3 + $0xa8] sm:$0xff]
  %v227 = vld [vmem:[%s3 + $0xb0] sm:$0xf]
  %v228 = vld [vmem:[%s3 + $0xb4] sm:$0xff]
  %v229 = vld [vmem:[%s3 + $0xbc] sm:$0xf]
  %v230 = vld [vmem:[%s3 + $0xc0] sm:$0xff]
  %v231 = vld [vmem:[%s3 + $0xc8] sm:$0xf]
  %v232 = vld [vmem:[%s3 + $0xcc] sm:$0xff]
  %v233 = vld [vmem:[%s3 + $0xd4] sm:$0xf]
  %v234 = vld [vmem:[%s3 + $0xd8] sm:$0xff]
  %v235 = vld [vmem:[%s3 + $0xe0] sm:$0xf]
  %v236 = vld [vmem:[%s3 + $0xe4] sm:$0xff]
  %v237 = vld [vmem:[%s3 + $0xec] sm:$0xf]
  %v238 = vld [vmem:[%s4] sm:$0x7]
  %v240 = vlaneseq
  %v241 = vshrl.u32 %v240, 7
  %v242 = vsub.s32 0, %v241
  %v243 = vrot.slane %v238, %v242
  %v244 = vlaneseq
  %v245 = vshrl.u32 %v244, 7
  %v246 = vsub.s32 1, %v245
  %v247 = vrot.slane %v238, %v246
  %v248 = vlaneseq
  %v249 = vshrl.u32 %v248, 7
  %v250 = vsub.s32 2, %v249
  %v251 = vrot.slane %v238, %v250
  %v295 = vunpack.c.l.b16 %v198
  %v296 = vunpack.c.h.b16 %v198
  %v297 = vunpack.c.l.b16 %v199
  %v298 = vunpack.c.l.b16 %v200
  %v299 = vunpack.c.h.b16 %v200
  %v300 = vunpack.c.l.b16 %v201
  %v301 = vunpack.c.l.b16 %v202
  %v302 = vunpack.c.h.b16 %v202
  %v303 = vunpack.c.l.b16 %v203
  %v304 = vunpack.c.l.b16 %v204
  %v305 = vunpack.c.h.b16 %v204
  %v306 = vunpack.c.l.b16 %v205
  %v307 = vunpack.c.l.b16 %v206
  %v308 = vunpack.c.h.b16 %v206
  %v309 = vunpack.c.l.b16 %v207
  %v310 = vunpack.c.l.b16 %v208
  %v311 = vunpack.c.h.b16 %v208
  %v312 = vunpack.c.l.b16 %v209
  %v313 = vunpack.c.l.b16 %v210
  %v314 = vunpack.c.h.b16 %v210
  %v315 = vunpack.c.l.b16 %v211
  %v316 = vunpack.c.l.b16 %v212
  %v317 = vunpack.c.h.b16 %v212
  %v318 = vunpack.c.l.b16 %v213
  %v319 = vunpack.c.l.b16 %v214
  %v320 = vunpack.c.h.b16 %v214
  %v321 = vunpack.c.l.b16 %v215
  %v322 = vunpack.c.l.b16 %v216
  %v323 = vunpack.c.h.b16 %v216
  %v324 = vunpack.c.l.b16 %v217
  %v325 = vunpack.c.l.b16 %v218
  %v326 = vunpack.c.h.b16 %v218
  %v327 = vunpack.c.l.b16 %v219
  %v328 = vunpack.c.l.b16 %v220
  %v329 = vunpack.c.h.b16 %v220
  %v330 = vunpack.c.l.b16 %v221
  %v331 = vunpack.c.l.b16 %v222
  %v332 = vunpack.c.h.b16 %v222
  %v333 = vunpack.c.l.b16 %v223
  %v334 = vunpack.c.l.b16 %v224
  %v335 = vunpack.c.h.b16 %v224
  %v336 = vunpack.c.l.b16 %v225
  %v337 = vunpack.c.l.b16 %v226
  %v338 = vunpack.c.h.b16 %v226
  %v339 = vunpack.c.l.b16 %v227
  %v340 = vunpack.c.l.b16 %v228
  %v341 = vunpack.c.h.b16 %v228
  %v342 = vunpack.c.l.b16 %v229
  %v343 = vunpack.c.l.b16 %v230
  %v344 = vunpack.c.h.b16 %v230
  %v345 = vunpack.c.l.b16 %v231
  %v346 = vunpack.c.l.b16 %v232
  %v347 = vunpack.c.h.b16 %v232
  %v348 = vunpack.c.l.b16 %v233
  %v349 = vunpack.c.l.b16 %v234
  %v350 = vunpack.c.h.b16 %v234
  %v351 = vunpack.c.l.b16 %v235
  %v352 = vunpack.c.l.b16 %v236
  %v353 = vunpack.c.h.b16 %v236
  %v354 = vunpack.c.l.b16 %v237
  %v355 = vpack.c.b16 %v298, %v295
  %v356 = vpack.c.b16 %v299, %v296
  %v357 = vpack.c.b16 %v300, %v297
  %v358 = vpack.c.b16 %v304, %v301
  %v359 = vpack.c.b16 %v305, %v302
  %v360 = vpack.c.b16 %v306, %v303
  %v361 = vpack.c.b16 %v310, %v307
  %v362 = vpack.c.b16 %v311, %v308
  %v363 = vpack.c.b16 %v312, %v309
  %v364 = vpack.c.b16 %v316, %v313
  %v365 = vpack.c.b16 %v317, %v314
  %v366 = vpack.c.b16 %v318, %v315
  %v367 = vpack.c.b16 %v322, %v319
  %v368 = vpack.c.b16 %v323, %v320
  %v369 = vpack.c.b16 %v324, %v321
  %v370 = vpack.c.b16 %v328, %v325
  %v371 = vpack.c.b16 %v329, %v326
  %v372 = vpack.c.b16 %v330, %v327
  %v373 = vpack.c.b16 %v334, %v331
  %v374 = vpack.c.b16 %v335, %v332
  %v375 = vpack.c.b16 %v336, %v333
  %v376 = vpack.c.b16 %v340, %v337
  %v377 = vpack.c.b16 %v341, %v338
  %v378 = vpack.c.b16 %v342, %v339
  %v379 = vpack.c.b16 %v346, %v343
  %v380 = vpack.c.b16 %v347, %v344
  %v381 = vpack.c.b16 %v348, %v345
  %v382 = vpack.c.b16 %v352, %v349
  %v383 = vpack.c.b16 %v353, %v350
  %v384 = vpack.c.b16 %v354, %v351
  %vm415 = vcmask 261120
  %v417 = vsel %vm415, %v197, 0
  %419 = vmatprep.subr.bf16.mxu0 %v377
  %420 = vmatpush1.bf16.msra.mxu0 %v376
  %421 = vmatprep.subr.bf16.mxu0 %v374
  %422 = vmatpush1.bf16.msra.mxu0 %v373
  %423 = vmatprep.subr.bf16.mxu0 %v371
  %424 = vmatpush1.bf16.msra.mxu0 %v370
  %425 = vmatprep.subr.bf16.mxu0 %v368
  %426 = vmatpush1.bf16.msra.mxu0 %v367
  %427 = vmatprep.subr.bf16.mxu0 %v365
  %428 = vmatpush1.bf16.msra.mxu0 %v364
  %429 = vmatprep.subr.bf16.mxu0 %v362
  %430 = vmatpush1.bf16.msra.mxu0 %v361
  %431 = vmatprep.subr.bf16.mxu0 %v359
  %432 = vmatpush1.bf16.msra.mxu0 %v358
  %433 = vmatprep.subr.bf16.mxu0 %v356
  %434 = vmatpush1.bf16.msra.mxu0 %v355
  %435 = vmatprep.subr.bf16.mxu0 0
  %436 = vmatpush2.bf16.msra.mxu0 0
  %437 = vmatprep.subr.bf16.mxu0 0
  %438 = vmatpush2.bf16.msra.mxu0 0
  %439 = vmatprep.subr.bf16.mxu0 0
  %440 = vmatpush2.bf16.msra.mxu0 0
  %441 = vmatprep.subr.bf16.mxu0 0
  %442 = vmatpush2.bf16.msra.mxu0 0
  %443 = vmatprep.subr.bf16.mxu0 0
  %444 = vmatpush2.bf16.msra.mxu0 0
  %445 = vmatprep.subr.bf16.mxu0 0
  %446 = vmatpush2.bf16.msra.mxu0 0
  %447 = vmatprep.subr.bf16.mxu0 %v383
  %448 = vmatpush2.bf16.msra.mxu0 %v382
  %449 = vmatprep.subr.bf16.mxu0 %v380
  %450 = vmatpush2.bf16.msra.mxu0 %v379
  %451 = vmatprep.mubr.bf16.mxu0 %v417
  %452 = vmatmul.mubr.bf16.gmra.mxu0 %v196
  %v453 = vpop.f32.mrf.mxu0
  %v454 = vadd.f32 %v243, %v453
  %v455 = vpop.f32.mrf.mxu0
  %v456 = vadd.f32 %v247, %v455
  %v457 = vpop.f32.mrf.mxu0
  %v458 = vadd.f32 %v243, %v457
  %v459 = vpop.f32.mrf.mxu0
  %v460 = vadd.f32 %v247, %v459
  %461 = vdwg.mxu0
  %462 = vmatprep.subr.bf16.mxu0 0
  %463 = vmatpush1.bf16.msra.mxu0 %v378
  %464 = vmatprep.subr.bf16.mxu0 0
  %465 = vmatpush1.bf16.msra.mxu0 %v375
  %466 = vmatprep.subr.bf16.mxu0 0
  %467 = vmatpush1.bf16.msra.mxu0 %v372
  %468 = vmatprep.subr.bf16.mxu0 0
  %469 = vmatpush1.bf16.msra.mxu0 %v369
  %470 = vmatprep.subr.bf16.mxu0 0
  %471 = vmatpush1.bf16.msra.mxu0 %v366
  %472 = vmatprep.subr.bf16.mxu0 0
  %473 = vmatpush1.bf16.msra.mxu0 %v363
  %474 = vmatprep.subr.bf16.mxu0 0
  %475 = vmatpush1.bf16.msra.mxu0 %v360
  %476 = vmatprep.subr.bf16.mxu0 0
  %477 = vmatpush1.bf16.msra.mxu0 %v357
  %478 = vmatprep.subr.bf16.mxu0 0
  %479 = vmatpush2.bf16.msra.mxu0 0
  %480 = vmatprep.subr.bf16.mxu0 0
  %481 = vmatpush2.bf16.msra.mxu0 0
  %482 = vmatprep.subr.bf16.mxu0 0
  %483 = vmatpush2.bf16.msra.mxu0 0
  %484 = vmatprep.subr.bf16.mxu0 0
  %485 = vmatpush2.bf16.msra.mxu0 0
  %486 = vmatprep.subr.bf16.mxu0 0
  %487 = vmatpush2.bf16.msra.mxu0 0
  %488 = vmatprep.subr.bf16.mxu0 0
  %489 = vmatpush2.bf16.msra.mxu0 0
  %490 = vmatprep.subr.bf16.mxu0 0
  %491 = vmatpush2.bf16.msra.mxu0 %v384
  %492 = vmatprep.subr.bf16.mxu0 0
  %493 = vmatpush2.bf16.msra.mxu0 %v381
  %494 = vmatprep.mubr.bf16.mxu0 %v417
  %495 = vmatmul.mubr.bf16.gmra.mxu0 %v196
  %v496 = vpop.f32.mrf.mxu0
  %v497 = vadd.f32 %v251, %v496
  %v498 = vpop.f32.mrf.mxu0
  %v499 = vpop.f32.mrf.mxu0
  %v500 = vadd.f32 %v251, %v499
  %v501 = vpop.f32.mrf.mxu0
  %502 = vdwg.mxu0
  %v503 = vmax.f32 %v454, 0.0
  %v504 = vmax.f32 %v456, 0.0
  %v505 = vmax.f32 %v497, 0.0
  %v506 = vmax.f32 %v458, 0.0
  %v507 = vmax.f32 %v460, 0.0
  %v508 = vmax.f32 %v500, 0.0
  %v509 = vpack.c.bf16 %v506, %v503
  %v510 = vpack.c.bf16 %v507, %v504
  %v511 = vpack.c.bf16 %v508, %v505
  %v512 = vld [vmem:[%s5] sm:$0xf]
  %v513 = vld [vmem:[%s5 + $0x4] sm:$0xf]
  %v514 = vld [vmem:[%s5 + $0x8] sm:$0xf]
  %v515 = vld [vmem:[%s5 + $0xc] sm:$0xf]
  %v516 = vld [vmem:[%s5 + $0x10] sm:$0xf]
  %v517 = vld [vmem:[%s5 + $0x14] sm:$0xf]
  %v518 = vld [vmem:[%s5 + $0x18] sm:$0xf]
  %v519 = vld [vmem:[%s5 + $0x1c] sm:$0xf]
  %v520 = vld [vmem:[%s5 + $0x20] sm:$0xf]
  %v521 = vld [vmem:[%s5 + $0x24] sm:$0xf]
  %v522 = vld [vmem:[%s5 + $0x28] sm:$0xf]
  %v523 = vld [vmem:[%s5 + $0x2c] sm:$0xf]
  %v524 = vld [vmem:[%s5 + $0x30] sm:$0xf]
  %v525 = vld [vmem:[%s5 + $0x34] sm:$0xf]
  %v526 = vld [vmem:[%s5 + $0x38] sm:$0xf]
  %v527 = vld [vmem:[%s5 + $0x3c] sm:$0xf]
  %v528 = vld [vmem:[%s5 + $0x40] sm:$0xf]
  %v529 = vld [vmem:[%s5 + $0x44] sm:$0xf]
  %v530 = vld [vmem:[%s5 + $0x48] sm:$0xf]
  %v531 = vld [vmem:[%s5 + $0x4c] sm:$0xf]
  %v532 = vld [vmem:[%s5 + $0x50] sm:$0xf]
  %v533 = vld [vmem:[%s5 + $0x54] sm:$0xf]
  %v534 = vld [vmem:[%s5 + $0x58] sm:$0xf]
  %v535 = vld [vmem:[%s5 + $0x5c] sm:$0xf]
  %v536 = vld [vmem:[%s5 + $0x60] sm:$0xf]
  %v537 = vld [vmem:[%s5 + $0x64] sm:$0xf]
  %v538 = vld [vmem:[%s5 + $0x68] sm:$0xf]
  %v539 = vld [vmem:[%s5 + $0x6c] sm:$0xf]
  %v540 = vld [vmem:[%s5 + $0x70] sm:$0xf]
  %v541 = vld [vmem:[%s5 + $0x74] sm:$0xf]
  %v542 = vld [vmem:[%s5 + $0x78] sm:$0xf]
  %v543 = vld [vmem:[%s5 + $0x7c] sm:$0xf]
  %v544 = vld [vmem:[%s5 + $0x80] sm:$0xf]
  %v545 = vld [vmem:[%s5 + $0x84] sm:$0xf]
  %v546 = vld [vmem:[%s5 + $0x88] sm:$0xf]
  %v547 = vld [vmem:[%s5 + $0x8c] sm:$0xf]
  %v548 = vld [vmem:[%s5 + $0x90] sm:$0xf]
  %v549 = vld [vmem:[%s5 + $0x94] sm:$0xf]
  %v550 = vld [vmem:[%s5 + $0x98] sm:$0xf]
  %v551 = vld [vmem:[%s5 + $0x9c] sm:$0xf]
  %v552 = vld [vmem:[%s6] sm:$0x1]
  %v554 = vlaneseq
  %v555 = vshrl.u32 %v554, 7
  %v556 = vsub.s32 0, %v555
  %v557 = vrot.slane %v552, %v556
  %v599 = vunpack.c.l.b16 %v512
  %v600 = vunpack.c.l.b16 %v513
  %v601 = vunpack.c.l.b16 %v514
  %v602 = vunpack.c.l.b16 %v515
  %v603 = vunpack.c.l.b16 %v516
  %v604 = vunpack.c.l.b16 %v517
  %v605 = vunpack.c.l.b16 %v518
  %v606 = vunpack.c.l.b16 %v519
  %v607 = vunpack.c.l.b16 %v520
  %v608 = vunpack.c.l.b16 %v521
  %v609 = vunpack.c.l.b16 %v522
  %v610 = vunpack.c.l.b16 %v523
  %v611 = vunpack.c.l.b16 %v524
  %v612 = vunpack.c.l.b16 %v525
  %v613 = vunpack.c.l.b16 %v526
  %v614 = vunpack.c.l.b16 %v527
  %v615 = vunpack.c.l.b16 %v528
  %v616 = vunpack.c.l.b16 %v529
  %v617 = vunpack.c.l.b16 %v530
  %v618 = vunpack.c.l.b16 %v531
  %v619 = vunpack.c.l.b16 %v532
  %v620 = vunpack.c.l.b16 %v533
  %v621 = vunpack.c.l.b16 %v534
  %v622 = vunpack.c.l.b16 %v535
  %v623 = vunpack.c.l.b16 %v536
  %v624 = vunpack.c.l.b16 %v537
  %v625 = vunpack.c.l.b16 %v538
  %v626 = vunpack.c.l.b16 %v539
  %v627 = vunpack.c.l.b16 %v540
  %v628 = vunpack.c.l.b16 %v541
  %v629 = vunpack.c.l.b16 %v542
  %v630 = vunpack.c.l.b16 %v543
  %v631 = vunpack.c.l.b16 %v544
  %v632 = vunpack.c.l.b16 %v545
  %v633 = vunpack.c.l.b16 %v546
  %v634 = vunpack.c.l.b16 %v547
  %v635 = vunpack.c.l.b16 %v548
  %v636 = vunpack.c.l.b16 %v549
  %v637 = vunpack.c.l.b16 %v550
  %v638 = vunpack.c.l.b16 %v551
  %v639 = vpack.c.b16 %v600, %v599
  %v640 = vpack.c.b16 %v602, %v601
  %v641 = vpack.c.b16 %v604, %v603
  %v642 = vpack.c.b16 %v606, %v605
  %v643 = vpack.c.b16 %v608, %v607
  %v644 = vpack.c.b16 %v610, %v609
  %v645 = vpack.c.b16 %v612, %v611
  %v646 = vpack.c.b16 %v614, %v613
  %v647 = vpack.c.b16 %v616, %v615
  %v648 = vpack.c.b16 %v618, %v617
  %v649 = vpack.c.b16 %v620, %v619
  %v650 = vpack.c.b16 %v622, %v621
  %v651 = vpack.c.b16 %v624, %v623
  %v652 = vpack.c.b16 %v626, %v625
  %v653 = vpack.c.b16 %v628, %v627
  %v654 = vpack.c.b16 %v630, %v629
  %v655 = vpack.c.b16 %v632, %v631
  %v656 = vpack.c.b16 %v634, %v633
  %v657 = vpack.c.b16 %v636, %v635
  %v658 = vpack.c.b16 %v638, %v637
  %vm679 = vcmask 523264
  %v681 = vsel %vm679, %v511, 0
  %683 = vmatprep.subr.bf16.mxu0 0
  %684 = vmatpush1.bf16.msra.mxu0 %v646
  %685 = vmatprep.subr.bf16.mxu0 0
  %686 = vmatpush1.bf16.msra.mxu0 %v645
  %687 = vmatprep.subr.bf16.mxu0 0
  %688 = vmatpush1.bf16.msra.mxu0 %v644
  %689 = vmatprep.subr.bf16.mxu0 0
  %690 = vmatpush1.bf16.msra.mxu0 %v643
  %691 = vmatprep.subr.bf16.mxu0 0
  %692 = vmatpush1.bf16.msra.mxu0 %v642
  %693 = vmatprep.subr.bf16.mxu0 0
  %694 = vmatpush1.bf16.msra.mxu0 %v641
  %695 = vmatprep.subr.bf16.mxu0 0
  %696 = vmatpush1.bf16.msra.mxu0 %v640
  %697 = vmatprep.subr.bf16.mxu0 0
  %698 = vmatpush1.bf16.msra.mxu0 %v639
  %699 = vmatprep.subr.bf16.mxu0 0
  %700 = vmatpush2.bf16.msra.mxu0 %v654
  %701 = vmatprep.subr.bf16.mxu0 0
  %702 = vmatpush2.bf16.msra.mxu0 %v653
  %703 = vmatprep.subr.bf16.mxu0 0
  %704 = vmatpush2.bf16.msra.mxu0 %v652
  %705 = vmatprep.subr.bf16.mxu0 0
  %706 = vmatpush2.bf16.msra.mxu0 %v651
  %707 = vmatprep.subr.bf16.mxu0 0
  %708 = vmatpush2.bf16.msra.mxu0 %v650
  %709 = vmatprep.subr.bf16.mxu0 0
  %710 = vmatpush2.bf16.msra.mxu0 %v649
  %711 = vmatprep.subr.bf16.mxu0 0
  %712 = vmatpush2.bf16.msra.mxu0 %v648
  %713 = vmatprep.subr.bf16.mxu0 0
  %714 = vmatpush2.bf16.msra.mxu0 %v647
  %715 = vmatprep.mubr.bf16.mxu0 %v510
  %716 = vmatmul.mubr.bf16.gmra.mxu0 %v509
  %v717 = vpop.f32.mrf.mxu0
  %v718 = vadd.f32 %v557, %v717
  %v719 = vpop.f32.mrf.mxu0
  %v720 = vpop.f32.mrf.mxu0
  %v721 = vadd.f32 %v557, %v720
  %v722 = vpop.f32.mrf.mxu0
  %723 = vdwg.mxu0
  %724 = vmatprep.subr.bf16.mxu0 0
  %725 = vmatpush1.bf16.msra.mxu0 0
  %726 = vmatprep.subr.bf16.mxu0 0
  %727 = vmatpush1.bf16.msra.mxu0 0
  %728 = vmatprep.subr.bf16.mxu0 0
  %729 = vmatpush1.bf16.msra.mxu0 0
  %730 = vmatprep.subr.bf16.mxu0 0
  %731 = vmatpush1.bf16.msra.mxu0 0
  %732 = vmatprep.subr.bf16.mxu0 0
  %733 = vmatpush1.bf16.msra.mxu0 %v658
  %734 = vmatprep.subr.bf16.mxu0 0
  %735 = vmatpush1.bf16.msra.mxu0 %v657
  %736 = vmatprep.subr.bf16.mxu0 0
  %737 = vmatpush1.bf16.msra.mxu0 %v656
  %738 = vmatprep.subr.bf16.mxu0 0
  %739 = vmatpush1.bf16.msra.mxu0 %v655
  %740 = vmatprep.subr.bf16.mxu0 0
  %741 = vmatpush2.bf16.msra.mxu0 0
  %742 = vmatprep.subr.bf16.mxu0 0
  %743 = vmatpush2.bf16.msra.mxu0 0
  %744 = vmatprep.subr.bf16.mxu0 0
  %745 = vmatpush2.bf16.msra.mxu0 0
  %746 = vmatprep.subr.bf16.mxu0 0
  %747 = vmatpush2.bf16.msra.mxu0 0
  %748 = vmatprep.subr.bf16.mxu0 0
  %749 = vmatpush2.bf16.msra.mxu0 0
  %750 = vmatprep.subr.bf16.mxu0 0
  %751 = vmatpush2.bf16.msra.mxu0 0
  %752 = vmatprep.subr.bf16.mxu0 0
  %753 = vmatpush2.bf16.msra.mxu0 0
  %754 = vmatprep.subr.bf16.mxu0 0
  %755 = vmatpush2.bf16.msra.mxu0 0
  %756 = vmatprep.mubr.bf16.mxu0 0
  %757 = vmatmul.mubr.bf16.gmra.mxu0 %v681
  %v758 = vpop.f32.mrf.mxu0
  %v759 = vadd.f32 %v718, %v758
  %v760 = vpop.f32.mrf.mxu0
  %v761 = vpop.f32.mrf.mxu0
  %v762 = vadd.f32 %v721, %v761
  %v763 = vpop.f32.mrf.mxu0
  %764 = vdwg.mxu0
  %v765 = vmax.f32 %v759, 0.0
  %v766 = vmax.f32 %v762, 0.0
  %v767 = vpack.c.bf16 %v766, %v765
  %v768 = vld [vmem:[%s7] sm:$0xf]
  %v769 = vld [vmem:[%s7 + $0x4] sm:$0xf]
  %v770 = vld [vmem:[%s8] sm:$0x1]
  %v772 = vlaneseq
  %v773 = vshrl.u32 %v772, 7
  %v774 = vsub.s32 0, %v773
  %v775 = vrot.slane %v770, %v774
  %v779 = vunpack.c.l.b16 %v768
  %v780 = vunpack.c.l.b16 %v769
  %v781 = vpack.c.b16 %v780, %v779
  %vm783 = vcmask 130048
  %v785 = vsel %vm783, %v767, 0
  %787 = vmatprep.subr.bf16.mxu0 0
  %788 = vmatpush1.bf16.msra.mxu0 0
  %789 = vmatprep.subr.bf16.mxu0 0
  %790 = vmatpush1.bf16.msra.mxu0 0
  %791 = vmatprep.subr.bf16.mxu0 0
  %792 = vmatpush1.bf16.msra.mxu0 0
  %793 = vmatprep.subr.bf16.mxu0 0
  %794 = vmatpush1.bf16.msra.mxu0 0
  %795 = vmatprep.subr.bf16.mxu0 0
  %796 = vmatpush1.bf16.msra.mxu0 0
  %797 = vmatprep.subr.bf16.mxu0 0
  %798 = vmatpush1.bf16.msra.mxu0 0
  %799 = vmatprep.subr.bf16.mxu0 0
  %800 = vmatpush1.bf16.msra.mxu0 0
  %801 = vmatprep.subr.bf16.mxu0 0
  %802 = vmatpush1.bf16.msra.mxu0 %v781
  %803 = vmatprep.subr.bf16.mxu0 0
  %804 = vmatpush2.bf16.msra.mxu0 0
  %805 = vmatprep.subr.bf16.mxu0 0
  %806 = vmatpush2.bf16.msra.mxu0 0
  %807 = vmatprep.subr.bf16.mxu0 0
  %808 = vmatpush2.bf16.msra.mxu0 0
  %809 = vmatprep.subr.bf16.mxu0 0
  %810 = vmatpush2.bf16.msra.mxu0 0
  %811 = vmatprep.subr.bf16.mxu0 0
  %812 = vmatpush2.bf16.msra.mxu0 0
  %813 = vmatprep.subr.bf16.mxu0 0
  %814 = vmatpush2.bf16.msra.mxu0 0
  %815 = vmatprep.subr.bf16.mxu0 0
  %816 = vmatpush2.bf16.msra.mxu0 0
  %817 = vmatprep.subr.bf16.mxu0 0
  %818 = vmatpush2.bf16.msra.mxu0 0
  %819 = vmatprep.mubr.bf16.mxu0 0
  %820 = vmatmul.mubr.bf16.gmra.mxu0 %v785
  %v821 = vpop.f32.mrf.mxu0
  %v822 = vadd.f32 %v775, %v821
  %v823 = vpop.f32.mrf.mxu0
  %v824 = vpop.f32.mrf.mxu0
  %v825 = vadd.f32 %v775, %v824
  %v826 = vpop.f32.mrf.mxu0
  %827 = vdwg.mxu0
  %v828 = vmax.f32 %v822, 0.0
  %v829 = vmax.f32 %v825, 0.0
  %v830 = vpack.c.bf16 %v829, %v828
  %v832 = vunpack.c.l.b16 %v830
  %v833 = vunpack.c.h.b16 %v830
  %v834 = vpack.c.b16 %v832, %v832
  %v835 = vpack.c.b16 %v833, %v833
  %838 = vst [vmem:[%s9] sm:$0xf] %v834
  %839 = vst [vmem:[%s9 + $0x4] sm:$0xf] %v835
  // Predicated region
  $region38: #{dqn_forward.1} parent=0 // pred_check
    _
  $region39: #{dqn_forward.1} parent=0 // pred_check_branch
    %841 = sbr.rel (0) target = $region41
  $region40: #{dqn_forward.1} parent=0 // pred_region
    _
  $region41: #{dqn_forward.1} parent=0 // pred_fallthru
    _
  // Predicated region
  $region42: #{dqn_forward.1} parent=0 // pred_check
    _
  $region43: #{dqn_forward.1} parent=0 // pred_check_branch
    %843 = sbr.rel (0) target = $region45
  $region44: #{dqn_forward.1} parent=0 // pred_region
    _
  $region45: #{dqn_forward.1} parent=0 // pred_fallthru
    _

</llo_original>
